<compile_context>
chip_gen: v7x
topology: tpu7x:2x2x1
jax: 0.10.0
libtpu: 0.0.40
codegen_flags: <defaults>
</compile_context>

<pallas_src>
import numpy as np
import jax
import jax.numpy as jnp
from jax.experimental import pallas as pl
from jax.experimental.pallas import tpu as pltpu


LANE = 128


def _round_up(n, m):
    return ((n + m - 1) // m) * m


def reluz_kernel(x_ref, lam_ref, out_ref, aux_ref):
    """Hot path: bounds (reduction over K), fused mask scale, d, scaled output.

    x_ref:   (K, TILE_F)      zonotope block
    lam_ref: (1, TILE_F)      learnable lambdas
    out_ref: (K, TILE_F)      transformed zonotope (before K-extension)
    aux_ref: (2, TILE_F)      row 0 = l_0_u mask, row 1 = d / 2
    """
    x = x_ref[...]                     # (K, TILE_F)
    lam = lam_ref[...]                 # (1, TILE_F)

    center = x[0:1, :]                                                  # (1, T)
    # sum(|x[1:]|) == sum(|x|) - |x[0]|  (avoids an offset sublane slice)
    abs_sum = jnp.sum(jnp.abs(x), axis=0, keepdims=True) - jnp.abs(center)
    l = center - abs_sum                                                # lower bound
    u = center + abs_sum                                                # upper bound

    # heaviside(a) == relu(sign(a)) == (a > 0)
    _l = (l > 0).astype(x.dtype)
    l0u = jnp.logical_and(u > 0, l < 0).astype(x.dtype)                 # crossing mask

    half_d = 0.5 * jnp.maximum(-l * lam, u * (1.0 - lam))               # d / 2

    # Fused per-column scale: out = _l*x + l0u*lam*x == x * (_l + l0u*lam)
    scale = _l + l0u * lam                                              # (1, T)
    out = x * scale                                                     # single (K,T) mul
    out_ref[...] = out
    # Row-0-only update: out[0] += l0u * d/2
    out_ref[0:1, :] = out[0:1, :] + l0u * half_d

    # Pack the two (1,T) auxiliaries into one lane-dense (2,T) store.
    aux_ref[...] = jnp.concatenate([l0u, half_d], axis=0)


def reluz_pallas(x, lambdas, tile_f=512):
    """Run the ReLUZ hot path. Returns (out, l0u, half_d), all trimmed to F."""
    K, F = x.shape
    # Lane-dense tile: multiple of 128, aim for ~512 lanes, never larger than
    # the (padded) feature extent.
    tile_f = min(tile_f, _round_up(F, LANE))
    f_pad = _round_up(F, tile_f)
    if f_pad != F:
        # Zero padding => padded columns have l = u = 0 => l0u = 0, out = 0.
        x = jnp.pad(x, ((0, 0), (0, f_pad - F)))
        lambdas = jnp.pad(lambdas, ((0, 0), (0, f_pad - F)))

    grid = (pl.cdiv(f_pad, tile_f),)

    out, aux = pl.pallas_call(
        reluz_kernel,
        grid=grid,
        in_specs=[
            pl.BlockSpec((K, tile_f), lambda i: (0, i)),
            pl.BlockSpec((1, tile_f), lambda i: (0, i)),
        ],
        out_specs=(
            pl.BlockSpec((K, tile_f), lambda i: (0, i)),
            pl.BlockSpec((2, tile_f), lambda i: (0, i)),
        ),
        out_shape=(
            jax.ShapeDtypeStruct((K, f_pad), x.dtype),
            jax.ShapeDtypeStruct((2, f_pad), x.dtype),
        ),
        compiler_params=pltpu.CompilerParams(
            dimension_semantics=("parallel",),
        ),
    )(x, lambdas)

    out = out[:, :F]
    l0u = aux[0:1, :F]
    half_d = aux[1:2, :F]
    return out, l0u, half_d


def reluz_forward(x, lambdas):
    """Full ReLUZ.forward: Pallas kernel for the hot path + extend_Z glue.

    The number of appended error-term rows equals the number of crossing
    ReLUs, which is data dependent, so the output *shape* requires one host
    sync on the small (1, F) crossing mask.  The rows themselves are one-hot
    (rows of eye(F) for the crossing columns) scaled by d/2, so they are built
    with a cheap scatter — no dense eye(F) gather / multiply.
    """
    K, F = x.shape
    out, l0u, half_d = reluz_pallas(x, lambdas)

    # TODO(synk): the data-dependent K-extension forces this single host sync;
    # a fully on-device variant would need a max-crossings padded shape.
    idx = np.flatnonzero(np.asarray(l0u).reshape(-1) > 0)
    n = int(idx.shape[0])
    idx_dev = jnp.asarray(idx, dtype=jnp.int32)
    vals = jnp.zeros((n, F), dtype=out.dtype)
    vals = vals.at[jnp.arange(n), idx_dev].set(half_d.reshape(-1)[idx_dev])
    return jnp.concatenate([out, vals], axis=0)


def reluz_ref(x, lambdas, ones):
    """Pure-numpy transcription of the PyTorch forward for verification."""
    x = np.asarray(x).copy()
    lam = np.asarray(lambdas)
    ones = np.asarray(ones)
    l = (x[0] - np.abs(x[1:]).sum(0))[None]
    u = (x[0] + np.abs(x[1:]).sum(0))[None]
    _l = (l > 0).astype(x.dtype)
    l_0_u = ((u > 0) & (l < 0)).astype(x.dtype)
    d = np.maximum(-l * lam, u * (1.0 - lam))
    out = _l * x + l_0_u * lam * x
    out[0] += (l_0_u * d / 2.0)[0]
    ind = l_0_u.reshape(-1).astype(bool)
    vals = ones[ind] * (d / 2.0)
    return np.concatenate([out, vals], axis=0)


def _check(K, F, key):
    kx, kl = jax.random.split(key)
    x = jax.random.normal(kx, (K, F), dtype=jnp.float32)
    lambdas = jax.random.uniform(kl, (1, F), dtype=jnp.float32)
    ones = np.eye(F, dtype=np.float32)  # only used by the numpy reference

    y = jax.block_until_ready(reluz_forward(x, lambdas))
    ref = reluz_ref(x, lambdas, ones)
    assert y.shape == ref.shape, (y.shape, ref.shape)
    np.testing.assert_allclose(np.asarray(y), ref, rtol=1e-5, atol=1e-5)


if __name__ == "__main__":
    key = jax.random.PRNGKey(0)
    k1, k2 = jax.random.split(key)
    # Small shape consistent with the module: 1 center + 7 error terms, 32 features.
    _check(K=8, F=32, key=k1)
    # Non-aligned shape exercising F padding and multi-tile grid (2 feature tiles).
    _check(K=9, F=700, key=k2)
    print("KERNEL_OK")
</pallas_src>

<mosaic_0001>
module attributes {stable_mosaic.version = 11 : i64} {
  func.func @reluz_kernel(%arg0: i32, %arg1: memref<8x128xf32, #tpu.memory_space<vmem>>, %arg2: memref<1x128xf32, #tpu.memory_space<vmem>>, %arg3: memref<8x128xf32, #tpu.memory_space<vmem>>, %arg4: memref<2x128xf32, #tpu.memory_space<vmem>>) attributes {dimension_semantics = [#tpu.dimension_semantics<parallel>], iteration_bounds = array<i64: 1>, scalar_prefetch = 0 : i64, scratch_operands = 0 : i64, tpu.core_type = #tpu.core_type<tc>, window_params = [{transform_indices = @transform_0, window_bounds = array<i64: 8, 128>}, {transform_indices = @transform_1, window_bounds = array<i64: 1, 128>}, {transform_indices = @transform_2, window_bounds = array<i64: 8, 128>}, {transform_indices = @transform_3, window_bounds = array<i64: 2, 128>}]} {
    %c0 = arith.constant 0 : index
    %c0_0 = arith.constant 0 : index
    %0 = vector.load %arg1[%c0, %c0_0] : memref<8x128xf32, #tpu.memory_space<vmem>>, vector<8x128xf32>
    %c0_1 = arith.constant 0 : index
    %c0_2 = arith.constant 0 : index
    %1 = vector.load %arg2[%c0_1, %c0_2] : memref<1x128xf32, #tpu.memory_space<vmem>>, vector<1x128xf32>
    %2 = vector.extract_strided_slice %0 {offsets = [0, 0], sizes = [1, 128], strides = [1, 1]} : vector<8x128xf32> to vector<1x128xf32>
    %3 = math.absf %0 : vector<8x128xf32>
    %cst = arith.constant dense<0.000000e+00> : vector<128xf32>
    %4 = vector.multi_reduction <add>, %3, %cst [0] : vector<8x128xf32> to vector<128xf32>
    %5 = vector.shape_cast %4 : vector<128xf32> to vector<1x128xf32>
    %6 = math.absf %2 : vector<1x128xf32>
    %7 = arith.subf %5, %6 : vector<1x128xf32>
    %8 = arith.subf %2, %7 : vector<1x128xf32>
    %9 = arith.addf %2, %7 : vector<1x128xf32>
    %cst_3 = arith.constant 0.000000e+00 : f32
    %10 = vector.broadcast %cst_3 : f32 to vector<1x128xf32>
    %11 = arith.cmpf ogt, %8, %10 : vector<1x128xf32>
    %12 = arith.extui %11 : vector<1x128xi1> to vector<1x128xi32>
    %13 = arith.sitofp %12 : vector<1x128xi32> to vector<1x128xf32>
    %cst_4 = arith.constant 0.000000e+00 : f32
    %14 = vector.broadcast %cst_4 : f32 to vector<1x128xf32>
    %15 = arith.cmpf ogt, %9, %14 : vector<1x128xf32>
    %cst_5 = arith.constant 0.000000e+00 : f32
    %16 = vector.broadcast %cst_5 : f32 to vector<1x128xf32>
    %17 = arith.cmpf olt, %8, %16 : vector<1x128xf32>
    %18 = arith.andi %15, %17 : vector<1x128xi1>
    %19 = arith.extui %18 : vector<1x128xi1> to vector<1x128xi32>
    %20 = arith.sitofp %19 : vector<1x128xi32> to vector<1x128xf32>
    %cst_6 = arith.constant 0.000000e+00 : f32
    %21 = vector.broadcast %cst_6 : f32 to vector<1x128xf32>
    %22 = arith.subf %21, %8 : vector<1x128xf32>
    %23 = arith.mulf %22, %1 : vector<1x128xf32>
    %cst_7 = arith.constant 1.000000e+00 : f32
    %24 = vector.broadcast %cst_7 : f32 to vector<1x128xf32>
    %25 = arith.subf %24, %1 : vector<1x128xf32>
    %26 = arith.mulf %9, %25 : vector<1x128xf32>
    %27 = arith.maximumf %23, %26 : vector<1x128xf32>
    %cst_8 = arith.constant 5.000000e-01 : f32
    %28 = vector.broadcast %cst_8 : f32 to vector<1x128xf32>
    %29 = arith.mulf %28, %27 : vector<1x128xf32>
    %30 = arith.mulf %20, %1 : vector<1x128xf32>
    %31 = arith.addf %13, %30 : vector<1x128xf32>
    %32 = vector.broadcast %31 : vector<1x128xf32> to vector<8x128xf32>
    %33 = arith.mulf %0, %32 : vector<8x128xf32>
    %c0_9 = arith.constant 0 : index
    %c0_10 = arith.constant 0 : index
    %34 = vector.load %arg3[%c0_9, %c0_10] : memref<8x128xf32, #tpu.memory_space<vmem>>, vector<8x128xf32>
    tpu.vector_store %arg3[%c0_9, %c0_10], %33 {strides = array<i32>} : memref<8x128xf32, #tpu.memory_space<vmem>>, vector<8x128xf32>,
    %35 = vector.extract_strided_slice %33 {offsets = [0, 0], sizes = [1, 128], strides = [1, 1]} : vector<8x128xf32> to vector<1x128xf32>
    %36 = arith.mulf %20, %29 : vector<1x128xf32>
    %37 = arith.addf %35, %36 : vector<1x128xf32>
    %c0_11 = arith.constant 0 : index
    %c0_12 = arith.constant 0 : index
    %38 = vector.load %arg3[%c0_11, %c0_12] : memref<8x128xf32, #tpu.memory_space<vmem>>, vector<1x128xf32>
    tpu.vector_store %arg3[%c0_11, %c0_12], %37 {strides = array<i32>} : memref<8x128xf32, #tpu.memory_space<vmem>>, vector<1x128xf32>,
    %39 = tpu.concatenate %20, %29 in 0 : vector<1x128xf32>, vector<1x128xf32> -> vector<2x128xf32>
    %c0_13 = arith.constant 0 : index
    %c0_14 = arith.constant 0 : index
    %40 = vector.load %arg4[%c0_13, %c0_14] : memref<2x128xf32, #tpu.memory_space<vmem>>, vector<2x128xf32>
    tpu.vector_store %arg4[%c0_13, %c0_14], %39 {strides = array<i32>} : memref<2x128xf32, #tpu.memory_space<vmem>>, vector<2x128xf32>,
    return
  }
  func.func @transform_0(%arg0: i32) -> (i32, i32) {
    %c0_i32 = arith.constant 0 : i32
    %c0_i32_0 = arith.constant 0 : i32
    return %c0_i32, %arg0 : i32, i32
  }
  func.func @transform_1(%arg0: i32) -> (i32, i32) {
    %c0_i32 = arith.constant 0 : i32
    %c0_i32_0 = arith.constant 0 : i32
    return %c0_i32, %arg0 : i32, i32
  }
  func.func @transform_2(%arg0: i32) -> (i32, i32) {
    %c0_i32 = arith.constant 0 : i32
    %c0_i32_0 = arith.constant 0 : i32
    return %c0_i32, %arg0 : i32, i32
  }
  func.func @transform_3(%arg0: i32) -> (i32, i32) {
    %c0_i32 = arith.constant 0 : i32
    %c0_i32_0 = arith.constant 0 : i32
    return %c0_i32, %arg0 : i32, i32
  }
}

</mosaic_0001>

<llo_original>
// kernel: tpu_custom_call.1
$region0: #{tpu_custom_call.1}
  #allocation0 [shape = 'u32[]', space=smem, size = 0x4, offset = 0x4, fixed_abs, tag = 'smem constant byte address 0x4 - core index']
  #allocation1 [shape = 'u32[144,128]{1,0:T(1,128)}', space=vmem, size = 0x12000, scoped, tag = 'internal scratch']
  %s0 = inlined_call_operand.hbm [shape: f32[8,128], index: 0, kind: input, shape index: {}]
  %s1 = inlined_call_operand.vmem [shape: f32[1,128], index: 1, kind: input, shape index: {}]
  %s2 = inlined_call_operand.hbm [shape: f32[8,128], index: 2, kind: output, shape index: {0}]
  %s3 = inlined_call_operand.hbm [shape: f32[2,128], index: 3, kind: output, shape index: {1}]
  %4 = xla_tuple %s2, %s3
  %s5 = sld [smem:[#allocation0]]
  $region30: #{tpu_custom_call.1} parent=0
    _
  %s7 = ssub.s32 1, %s5
  %s8 = scalar_select 0, %s7, %s5
  $region1: #{tpu_custom_call.1} parent=0
    #allocation2 [shape = 'u8[4096]{0}', space=vmem, size = 0x1000, scoped, tag = 'input window, operand 0, single buffered']
    #allocation3 [shape = 's32[1]{0}', space=sflag, size = 0x4, scoped, tag = 'scoped memory for tpu_custom_call.1']
    #allocation4 [shape = 's32[1]{0}', space=sflag, size = 0x4, scoped, tag = 'scoped memory for tpu_custom_call.1']
    #allocation5 [shape = 'u8[4096]{0}', space=vmem, size = 0x1000, scoped, tag = 'output window, operand 0, single buffered']
    #allocation6 [shape = 'u8[1024]{0}', space=vmem, size = 0x400, scoped, tag = 'output window, operand 1, single buffered']
    #allocation7 [shape = 's32[1]{0}', space=sflag, size = 0x4, scoped, tag = 'scoped memory for tpu_custom_call.1']
    %9 = vsyncpa [#allocation3], 0
    %10 = vsyncpa [#allocation4], 0
    %11 = vsyncpa [#allocation7], 0
    // Predicated region
    $region2: #{tpu_custom_call.1} parent=1 // pred_check
      _
    $region3: #{tpu_custom_call.1} parent=1 // pred_check_branch
      %13 = sbr.rel (0) target = $region5
    $region4: #{tpu_custom_call.1} parent=1 // pred_region
      %s15 = ssub.s32 128, 128
      %16 = vsyncadd [#allocation3], %s15
      %s18 = sshll.u32 [#allocation2], 4
      %s19 = int_to_ptr.vmem [resolvable:$true] %s18
      %21 = dma.hbm_to_vmem [thread:$0]  %s0, 128, %s19, [#allocation3]
    $region5: #{tpu_custom_call.1} parent=1 // pred_fallthru
      _
    // Predicated region
    $region6: #{tpu_custom_call.1} parent=1 // pred_check
      _
    $region7: #{tpu_custom_call.1} parent=1 // pred_check_branch
      %23 = sbr.rel (0) target = $region9
    $region8: #{tpu_custom_call.1} parent=1 // pred_region
      _
    $region9: #{tpu_custom_call.1} parent=1 // pred_fallthru
      _
    // Predicated region
    $region10: #{tpu_custom_call.1} parent=1 // pred_check
      _
    $region11: #{tpu_custom_call.1} parent=1 // pred_check_branch
      %25 = sbr.rel (0) target = $region13
    $region12: #{tpu_custom_call.1} parent=1 // pred_region
      %26 = dma.done [#allocation3], 128
    $region13: #{tpu_custom_call.1} parent=1 // pred_fallthru
      _
    %v27 = vld [vmem:[#allocation2] sm:$0xff]
    %v28 = vld [vmem:[%s1] sm:$0x1]
    %v29 = vand.u32 2147483647, %v27
    %v30 = vrot.slane %v29, 4
    %v31 = vadd.f32 %v29, %v30
    %v32 = vrot.slane %v31, 2
    %v33 = vadd.f32 %v31, %v32
    %v34 = vrot.slane %v33, 1
    %v35 = vadd.f32 %v33, %v34
    %v36 = vsub.f32 %v35, %v29
    %v37 = vsub.f32 %v27, %v36
    %v38 = vadd.f32 %v27, %v36
    %vm39 = vcmp.gt.f32.partialorder %v37, 0.0
    %v40 = vsel %vm39, 1, 0
    %v41 = vcvt.s32.f32 %v40
    %vm42 = vcmp.gt.f32.partialorder %v38, 0.0
    %vm43 = vcmp.lt.f32.partialorder %v37, 0.0
    %vm44 = vmand %vm42, %vm43
    %v45 = vsel %vm44, 1, 0
    %v46 = vcvt.s32.f32 %v45
    %v47 = vsub.f32 0.0, %v37
    %v48 = vmul.f32 %v47, %v28
    %v49 = vsub.f32 1.0, %v28
    %v50 = vmul.f32 %v38, %v49
    %v51 = vmax.f32 %v48, %v50
    %v52 = vmul.f32 %v51, 0.5
    %v53 = vmul.f32 %v46, %v28
    %v54 = vadd.f32 %v41, %v53
    %v55 = vlaneseq
    %v56 = vshrl.u32 %v55, 7
    %v57 = vsub.s32 0, %v56
    %v58 = vrot.slane %v54, %v57
    %v59 = vmul.f32 %v27, %v58
    %60 = vst [vmem:[#allocation5] sm:$0xff] %v59
    %v61 = vmul.f32 %v46, %v52
    %v62 = vadd.f32 %v59, %v61
    %63 = vst [vmem:[#allocation5] sm:$0x1] %v62
    %v65 = vrot.slane %v52, 7
    %vm67 = vcmask 1040384
    %v68 = vsel %vm67, %v46, %v65
    %69 = vst [vmem:[#allocation6] sm:$0x3] %v68
    // Predicated region
    $region14: #{tpu_custom_call.1} parent=1 // pred_check
      _
    $region15: #{tpu_custom_call.1} parent=1 // pred_check_branch
      %71 = sbr.rel (0) target = $region17
    $region16: #{tpu_custom_call.1} parent=1 // pred_region
      %s73 = ssub.s32 128, 128
      %74 = vsyncadd [#allocation4], %s73
      %s76 = sshll.u32 [#allocation5], 4
      %s77 = int_to_ptr.vmem [resolvable:$true] %s76
      %79 = dma.vmem_to_hbm [thread:$0]  %s77, 128, %s2, [#allocation4]
    $region17: #{tpu_custom_call.1} parent=1 // pred_fallthru
      _
    // Predicated region
    $region18: #{tpu_custom_call.1} parent=1 // pred_check
      _
    $region19: #{tpu_custom_call.1} parent=1 // pred_check_branch
      %81 = sbr.rel (0) target = $region21
    $region20: #{tpu_custom_call.1} parent=1 // pred_region
      %s83 = ssub.s32 32, 32
      %84 = vsyncadd [#allocation7], %s83
      %s86 = sshll.u32 [#allocation6], 4
      %s87 = int_to_ptr.vmem [resolvable:$true] %s86
      %89 = dma.vmem_to_hbm [thread:$0]  %s87, 32, %s3, [#allocation7]
    $region21: #{tpu_custom_call.1} parent=1 // pred_fallthru
      _
    // Predicated region
    $region22: #{tpu_custom_call.1} parent=1 // pred_check
      _
    $region23: #{tpu_custom_call.1} parent=1 // pred_check_branch
      %91 = sbr.rel (0) target = $region25
    $region24: #{tpu_custom_call.1} parent=1 // pred_region
      %92 = dma.done [#allocation4], 128
    $region25: #{tpu_custom_call.1} parent=1 // pred_fallthru
      _
    // Predicated region
    $region26: #{tpu_custom_call.1} parent=1 // pred_check
      _
    $region27: #{tpu_custom_call.1} parent=1 // pred_check_branch
      %94 = sbr.rel (0) target = $region29
    $region28: #{tpu_custom_call.1} parent=1 // pred_region
      %95 = dma.done [#allocation7], 32
    $region29: #{tpu_custom_call.1} parent=1 // pred_fallthru
      _
    %96 = vsyncpa [#allocation3], 1
    %97 = vsyncpa [#allocation4], 1
    %98 = vsyncpa [#allocation7], 1

</llo_original>
